<compile_context>
chip_gen: v5e
topology: v5e:2x2
jax: 0.10.0
libtpu: 0.0.40
codegen_flags: <defaults>
</compile_context>

<pallas_src>
import math
from functools import partial

import jax
import jax.numpy as jnp
from jax.experimental import pallas as pl
from jax.experimental.pallas import tpu as pltpu


def _round_up(x: int, m: int) -> int:
    return ((x + m - 1) // m) * m


def _pick_tm(M: int) -> int:
    """Row-tile size: big tiles (mem-bound), >=2 grid steps for v7x megacore."""
    if M <= 16:
        return M  # block equals full dim -> always a legal block shape
    half = -(-M // 2)  # cdiv(M, 2)
    return min(1024, _round_up(half, 8))


def _head_matmul_kernel(x_ref, w_ref, o_ref):
    # x_ref: (tm, C_in)  tile of flattened pixels (input bytes are negligible)
    # w_ref: (C_in, feat) full weight, resident across all grid steps
    # o_ref: (tm, feat)   feat == full array dim, so stores stay unmasked for
    #                     whole 128-lane groups and only the last partial lane
    #                     group uses a masked vst.
    # K = C_in is tiny (MXU underutilized) but the kernel is store-bound, so
    # a single MXU dot per tile is fine.
    o_ref[...] = jnp.dot(
        x_ref[...], w_ref[...], preferred_element_type=jnp.float32
    ).astype(o_ref.dtype)


@partial(jax.jit, static_argnames=("num_anchors", "num_classes"))
def yolo_head_forward(x_nchw, weight_oi, num_anchors, num_classes):
    """x_nchw: (B, C_in, H, W); weight_oi: (feat_dim, C_in) conv1x1 weight."""
    B, C_in, H, W = x_nchw.shape
    feat_dim = weight_oi.shape[0]
    assert feat_dim == num_anchors * (5 + num_classes)
    M = B * H * W

    # Glue (fused under jit, tiny at C_in=4): NCHW -> NHWC -> (M, C_in);
    # weight (feat, C_in) -> (C_in, feat).
    # TODO(synk): for large C_in, read NCHW tiles directly in-kernel (contract
    # dim 0) instead of transposing the activation through HBM.
    x_rows = jnp.transpose(x_nchw, (0, 2, 3, 1)).reshape(M, C_in)
    w = jnp.transpose(weight_oi, (1, 0))  # (C_in, feat_dim)

    tm = _pick_tm(M)
    grid = (pl.cdiv(M, tm),)

    cost = pl.CostEstimate(
        flops=2 * M * C_in * feat_dim,
        transcendentals=0,
        bytes_accessed=4 * (M * C_in + C_in * feat_dim + M * feat_dim),
    )

    out_rows = pl.pallas_call(
        _head_matmul_kernel,
        out_shape=jax.ShapeDtypeStruct((M, feat_dim), x_nchw.dtype),
        grid_spec=pltpu.PrefetchScalarGridSpec(
            num_scalar_prefetch=0,
            grid=grid,
            in_specs=[
                pl.BlockSpec((tm, C_in), lambda i: (i, 0)),
                pl.BlockSpec((C_in, feat_dim), lambda i: (0, 0)),
            ],
            out_specs=pl.BlockSpec((tm, feat_dim), lambda i: (i, 0)),
        ),
        compiler_params=pltpu.CompilerParams(
            dimension_semantics=("parallel",),   # lets v7x split steps over 2 TCs
            # Scoped-VMEM cap (not a reservation); tiles here use only a few MiB.
            vmem_limit_bytes=64 * 1024 * 1024,
        ),
        cost_estimate=cost,
    )(x_rows, w)

    # Remaining PyTorch permute/reshape/flatten is a pure contiguous view:
    # (B*H*W, A*(5+C)) -> (B, H*W*A, 5+C).  Free reshape, no extra HBM pass.
    return out_rows.reshape(B, H * W * num_anchors, 5 + num_classes)


def init_conv1x1_weight(key, out_ch, in_ch, dtype=jnp.float32):
    # Matches nn.init.kaiming_uniform_(w, a=1): gain = sqrt(2/(1+1)) = 1,
    # fan_in = in_ch * 1 * 1, bound = gain * sqrt(3 / fan_in)
    bound = math.sqrt(3.0 / in_ch)
    return jax.random.uniform(
        key, (out_ch, in_ch), dtype=dtype, minval=-bound, maxval=bound
    )


if __name__ == "__main__":
    num_anchors = 3
    num_classes = 80
    in_channels = 4
    B, H, W = 2, 16, 16
    feat_dim = num_anchors * (5 + num_classes)  # 255

    key = jax.random.PRNGKey(0)
    kx, kw = jax.random.split(key)
    x = jax.random.normal(kx, (B, in_channels, H, W), dtype=jnp.float32)
    weight = init_conv1x1_weight(kw, feat_dim, in_channels)

    out = yolo_head_forward(x, weight, num_anchors, num_classes)
    out = jax.block_until_ready(out)

    # Reference check in plain JAX (1x1 conv == einsum over channels).
    ref = jnp.einsum("bchw,oc->bhwo", x, weight).reshape(
        B, H * W * num_anchors, 5 + num_classes
    )
    assert out.shape == (B, H * W * num_anchors, 5 + num_classes)
    assert jnp.allclose(out, ref, atol=1e-5, rtol=1e-5)

    print("KERNEL_OK")
</pallas_src>

<mosaic_0001>
module attributes {stable_mosaic.version = 11 : i64} {
  func.func @_head_matmul_kernel(%arg0: i32, %arg1: memref<256x4xf32, #tpu.memory_space<vmem>>, %arg2: memref<4x255xf32, #tpu.memory_space<vmem>>, %arg3: memref<256x255xf32, #tpu.memory_space<vmem>>) attributes {dimension_semantics = [#tpu.dimension_semantics<parallel>], iteration_bounds = array<i64: 2>, scalar_prefetch = 0 : i64, scratch_operands = 0 : i64, tpu.core_type = #tpu.core_type<tc>, window_params = [{transform_indices = @transform_0, window_bounds = array<i64: 256, 4>}, {pipeline_mode = #tpu.pipeline_mode<synchronous>, transform_indices = @transform_1, window_bounds = array<i64: 4, 255>}, {transform_indices = @transform_2, window_bounds = array<i64: 256, 255>}]} {
    %c0 = arith.constant 0 : index
    %c0_0 = arith.constant 0 : index
    %0 = vector.load %arg1[%c0, %c0_0] : memref<256x4xf32, #tpu.memory_space<vmem>>, vector<256x4xf32>
    %c0_1 = arith.constant 0 : index
    %c0_2 = arith.constant 0 : index
    %1 = vector.load %arg2[%c0_1, %c0_2] : memref<4x255xf32, #tpu.memory_space<vmem>>, vector<4x255xf32>
    %cst = arith.constant dense<0.000000e+00> : vector<256x255xf32>
    %2 = tpu.matmul %0, %1, %cst {dimension_numbers = #tpu.dot_dimension_numbers<[1], [0], [0], [1], [0, 0, 1, 1], [], []>} : vector<256x4xf32>, vector<4x255xf32>, vector<256x255xf32> -> vector<256x255xf32>
    %c0_3 = arith.constant 0 : index
    %c0_4 = arith.constant 0 : index
    %3 = vector.load %arg3[%c0_3, %c0_4] : memref<256x255xf32, #tpu.memory_space<vmem>>, vector<256x255xf32>
    tpu.vector_store %arg3[%c0_3, %c0_4], %2 {strides = array<i32>} : memref<256x255xf32, #tpu.memory_space<vmem>>, vector<256x255xf32>,
    return
  }
  func.func @transform_0(%arg0: i32) -> (i32, i32) {
    %c0_i32 = arith.constant 0 : i32
    %c0_i32_0 = arith.constant 0 : i32
    return %arg0, %c0_i32 : i32, i32
  }
  func.func @transform_1(%arg0: i32) -> (i32, i32) {
    %c0_i32 = arith.constant 0 : i32
    %c0_i32_0 = arith.constant 0 : i32
    %c0_i32_1 = arith.constant 0 : i32
    return %c0_i32, %c0_i32_0 : i32, i32
  }
  func.func @transform_2(%arg0: i32) -> (i32, i32) {
    %c0_i32 = arith.constant 0 : i32
    %c0_i32_0 = arith.constant 0 : i32
    return %arg0, %c0_i32 : i32, i32
  }
}

</mosaic_0001>

<llo_original>
// kernel: yolo_head_forward.1
$region0: #{yolo_head_forward.1}
  #allocation0 [shape = 'u32[]', space=smem, size = 0x4, offset = 0x4, fixed_abs, tag = 'smem constant byte address 0x4 - core index']
  #allocation1 [shape = 'u32[72,128]{1,0:T(1,128)}', space=vmem, size = 0x9000, scoped, tag = 'internal scratch']
  %s0 = inlined_call_operand.vmem [shape: f32[512,4], index: 0, kind: input, shape index: {}]
  %s1 = inlined_call_operand.vmem [shape: f32[4,255], index: 1, kind: input, shape index: {}]
  %s2 = inlined_call_operand.vmem [shape: f32[512,255], index: 2, kind: output, shape index: {}]
  %s3 = sld [smem:[#allocation0]]
  $region41: #{yolo_head_forward.1} parent=0
    _
  %s5 = ssub.s32 1, %s3
  %s6 = scalar_select 0, %s5, %s3
  loop: start=0, step=1, limit=4
  $region2: #{yolo_head_forward.1} parent=0 // loop_pre_header
    _
  $region3: #{yolo_head_forward.1} parent=0 // loop_header
    %s8 = sphi 0, %s12
    %p9 = scmp.ge.s32.totalorder %s8, 4
    %s18 = sphi 0, %s20
    %s21 = sphi 0, %s18
    %s22 = sphi 0, %s21
    %s38 = sphi 0, %s22
    %s42 = sphi 0, %s42
    %s44 = sphi 0, %s42
    %s45 = sphi 0, %s44
    %s59 = sphi 0, %s45
    %s65 = sphi 0, %s67
    %s68 = sphi 0, %s65
    %s69 = sphi 0, %s68
    %s85 = sphi 0, %s69
  $region4: #{yolo_head_forward.1} parent=0 // loop_header_branch
    %11 = sbr.rel (%p9) target = $region8
  $region5: #{yolo_head_forward.1} parent=0 // loop_body
    %s13 = ssub.s32 %s8, 1
    %s14 = ssub.s32 %s8, 2
    %s15 = sadd.s32 %s8, 1
    %s16 = ssub.s32 %s8, %s15
    %p17 = scmp.eq.s32.totalorder %s16, 0
    %s19 = sadd.s32 %s18, 1
    %s20 = scalar_select %p17, %s18, %s19
    %p23 = pneg %p17
    %p24 = scmp.eq.s32.totalorder %s8, 1
    %p25 = por %p23, %p24
    %p26 = scmp.ne.s32.totalorder %s18, %s21
    %p27 = scmp.eq.s32.totalorder %s8, 0
    %p28 = por %p26, %p27
    %p29 = scmp.ne.s32.totalorder %s18, %s21
    %p30 = scmp.eq.s32.totalorder %s13, 1
    %p31 = por %p29, %p30
    %p32 = scmp.ne.s32.totalorder %s21, %s22
    %p33 = scmp.eq.s32.totalorder %s13, 0
    %p34 = por %p32, %p33
    %p35 = scmp.ne.s32.totalorder %s21, %s22
    %p36 = scmp.eq.s32.totalorder %s14, 1
    %p37 = por %p35, %p36
    %p39 = scmp.ne.s32.totalorder %s22, %s38
    %p40 = scmp.eq.s32.totalorder %s14, 0
    %p41 = por %p39, %p40
    %s43 = sadd.s32 %s42, 1
    %p46 = scmp.eq.s32.totalorder %s8, 1
    %p47 = scmp.ne.s32.totalorder %s42, %s44
    %p48 = scmp.eq.s32.totalorder %s8, 0
    %p49 = por %p47, %p48
    %p50 = scmp.ne.s32.totalorder %s42, %s44
    %p51 = scmp.eq.s32.totalorder %s13, 1
    %p52 = por %p50, %p51
    %p53 = scmp.ne.s32.totalorder %s44, %s45
    %p54 = scmp.eq.s32.totalorder %s13, 0
    %p55 = por %p53, %p54
    %p56 = scmp.ne.s32.totalorder %s44, %s45
    %p57 = scmp.eq.s32.totalorder %s14, 1
    %p58 = por %p56, %p57
    %p60 = scmp.ne.s32.totalorder %s45, %s59
    %p61 = scmp.eq.s32.totalorder %s14, 0
    %p62 = por %p60, %p61
    %s63 = ssub.s32 %s8, %s15
    %p64 = scmp.eq.s32.totalorder %s63, 0
    %s66 = sadd.s32 %s65, 1
    %s67 = scalar_select %p64, %s65, %s66
    %p70 = pneg %p64
    %p71 = scmp.eq.s32.totalorder %s8, 1
    %p72 = por %p70, %p71
    %p73 = scmp.ne.s32.totalorder %s65, %s68
    %p74 = scmp.eq.s32.totalorder %s8, 0
    %p75 = por %p73, %p74
    %p76 = scmp.ne.s32.totalorder %s65, %s68
    %p77 = scmp.eq.s32.totalorder %s13, 1
    %p78 = por %p76, %p77
    %p79 = scmp.ne.s32.totalorder %s68, %s69
    %p80 = scmp.eq.s32.totalorder %s13, 0
    %p81 = por %p79, %p80
    %p82 = scmp.ne.s32.totalorder %s68, %s69
    %p83 = scmp.eq.s32.totalorder %s14, 1
    %p84 = por %p82, %p83
    %p86 = scmp.ne.s32.totalorder %s69, %s85
    %p87 = scmp.eq.s32.totalorder %s14, 0
    %p88 = por %p86, %p87
    %p89 = scmp.le.s32.totalorder 1, %s8
    %p90 = scmp.lt.s32.totalorder %s8, 3
    %p91 = pnand %p89, %p90
    %p92 = pneg %p91
    // Predicated region
    $region9: #{yolo_head_forward.1} parent=5 // pred_check
      _
    $region10: #{yolo_head_forward.1} parent=5 // pred_check_branch
      %94 = sbr.rel (%p91) target = $region12
    $region11: #{yolo_head_forward.1} parent=5 // pred_region
      %s95 = ssub.s32 %s8, 1
      // Predicated region
      $region13: #{yolo_head_forward.1} parent=11 // pred_check
        %p96 = pneg %p55
      $region14: #{yolo_head_forward.1} parent=11 // pred_check_branch
        %98 = sbr.rel (%p96) target = $region16
      $region15: #{yolo_head_forward.1} parent=11 // pred_region
        _
      $region16: #{yolo_head_forward.1} parent=11 // pred_fallthru
        _
    $region12: #{yolo_head_forward.1} parent=5 // pred_fallthru
      _
    %p99 = scmp.lt.s32.totalorder %s8, 2
    // Predicated region
    $region17: #{yolo_head_forward.1} parent=5 // pred_check
      %p100 = pneg %p99
    $region18: #{yolo_head_forward.1} parent=5 // pred_check_branch
      %102 = sbr.rel (%p100) target = $region20
    $region19: #{yolo_head_forward.1} parent=5 // pred_region
      // Predicated region
      $region21: #{yolo_head_forward.1} parent=19 // pred_check
        %p103 = pneg %p28
      $region22: #{yolo_head_forward.1} parent=19 // pred_check_branch
        %105 = sbr.rel (%p103) target = $region24
      $region23: #{yolo_head_forward.1} parent=19 // pred_region
        %s106 = smul.u32 32, %s8
        %p107 = scmp.lt.s32.totalorder %s106, 63
        %s108 = scalar_select %p107, %s106, 63
        %s109 = smul.addr %s108, 8
        %s110 = scalar_lea.vmem %s0, %s109
        %s111 = smul.u32 32, %s8
      $region24: #{yolo_head_forward.1} parent=19 // pred_fallthru
        _
    $region20: #{yolo_head_forward.1} parent=5 // pred_fallthru
      _
    %p112 = scmp.le.s32.totalorder 1, %s8
    %p113 = scmp.lt.s32.totalorder %s8, 3
    %p114 = pnand %p112, %p113
    %p115 = pneg %p114
    // Predicated region
    $region25: #{yolo_head_forward.1} parent=5 // pred_check
      _
    $region26: #{yolo_head_forward.1} parent=5 // pred_check_branch
      %117 = sbr.rel (%p114) target = $region28
    $region27: #{yolo_head_forward.1} parent=5 // pred_region
      %s118 = ssub.s32 %s8, 1
      %s119 = smul.u32 32, %s13
      %p120 = scmp.lt.s32.totalorder %s119, 63
      %s121 = scalar_select %p120, %s119, 63
      %s122 = smul.addr %s121, 8
      %s123 = scalar_lea.vmem %s0, %s122
      %p124 = pneg %p34
      %p125 = pneg %p31
      %p126 = pneg %p55
      %p127 = pneg %p52
      %p128 = pneg %p81
      %p129 = pneg %p78
      %s130 = smul.u32 32, %s13
      %p131 = scmp.lt.s32.totalorder %s130, 63
      %s132 = scalar_select %p131, %s130, 63
      %s133 = smul.addr %s132, 2
      %s134 = smul.addr %s133, 8
      %s135 = scalar_lea.vmem %s2, %s134
      %s136 = smul.u32 32, %s13
      %p137 = scmp.lt.s32.totalorder %s136, 63
      %s138 = scalar_select %p137, %s136, 63
      %s139 = smul.addr %s138, 8
      %s140 = scalar_lea.vmem %s0, %s139
      %s141 = smul.u32 32, %s13
      %s142 = smul.u32 32, %s13
      %p143 = scmp.lt.s32.totalorder %s142, 63
      %s144 = scalar_select %p143, %s142, 63
      %s145 = smul.addr %s144, 2
      %s146 = smul.addr %s145, 8
      %s147 = scalar_lea.vmem %s2, %s146
      %s148 = smul.u32 32, %s13
      %v149 = vld [vmem:[%s140] sm:$0xff]
      %v150 = vld [vmem:[%s140 + $0x8] sm:$0xff]
      %v151 = vld [vmem:[%s140 + $0x10] sm:$0xff]
      %v152 = vld [vmem:[%s140 + $0x18] sm:$0xff]
      %v153 = vld [vmem:[%s140 + $0x20] sm:$0xff]
      %v154 = vld [vmem:[%s140 + $0x28] sm:$0xff]
      %v155 = vld [vmem:[%s140 + $0x30] sm:$0xff]
      %v156 = vld [vmem:[%s140 + $0x38] sm:$0xff]
      %v157 = vld [vmem:[%s140 + $0x40] sm:$0xff]
      %v158 = vld [vmem:[%s140 + $0x48] sm:$0xff]
      %v159 = vld [vmem:[%s140 + $0x50] sm:$0xff]
      %v160 = vld [vmem:[%s140 + $0x58] sm:$0xff]
      %v161 = vld [vmem:[%s140 + $0x60] sm:$0xff]
      %v162 = vld [vmem:[%s140 + $0x68] sm:$0xff]
      %v163 = vld [vmem:[%s140 + $0x70] sm:$0xff]
      %v164 = vld [vmem:[%s140 + $0x78] sm:$0xff]
      %v165 = vld [vmem:[%s140 + $0x80] sm:$0xff]
      %v166 = vld [vmem:[%s140 + $0x88] sm:$0xff]
      %v167 = vld [vmem:[%s140 + $0x90] sm:$0xff]
      %v168 = vld [vmem:[%s140 + $0x98] sm:$0xff]
      %v169 = vld [vmem:[%s140 + $0xa0] sm:$0xff]
      %v170 = vld [vmem:[%s140 + $0xa8] sm:$0xff]
      %v171 = vld [vmem:[%s140 + $0xb0] sm:$0xff]
      %v172 = vld [vmem:[%s140 + $0xb8] sm:$0xff]
      %v173 = vld [vmem:[%s140 + $0xc0] sm:$0xff]
      %v174 = vld [vmem:[%s140 + $0xc8] sm:$0xff]
      %v175 = vld [vmem:[%s140 + $0xd0] sm:$0xff]
      %v176 = vld [vmem:[%s140 + $0xd8] sm:$0xff]
      %v177 = vld [vmem:[%s140 + $0xe0] sm:$0xff]
      %v178 = vld [vmem:[%s140 + $0xe8] sm:$0xff]
      %v179 = vld [vmem:[%s140 + $0xf0] sm:$0xff]
      %v180 = vld [vmem:[%s140 + $0xf8] sm:$0xff]
      %v181 = vld [vmem:[%s1] sm:$0xff]
      %183 = vst [vmem:[#allocation1] ss:$2 sm:$0xff] %v181
      %v184 = vld.sshfl [vmem:[#allocation1] sm:$0xff pattern:$0x75316420]
      %v185 = vld.sshfl [vmem:[#allocation1 + $0x8] sm:$0xff pattern:$0x75316420]
      %vm186 = vcmask 31744
      %v188 = vsel %vm186, %v149, 0
      %v191 = vsel %vm186, %v150, 0
      %v194 = vsel %vm186, %v151, 0
      %v197 = vsel %vm186, %v152, 0
      %v200 = vsel %vm186, %v153, 0
      %v203 = vsel %vm186, %v154, 0
      %v206 = vsel %vm186, %v155, 0
      %v209 = vsel %vm186, %v156, 0
      %v212 = vsel %vm186, %v157, 0
      %v215 = vsel %vm186, %v158, 0
      %v218 = vsel %vm186, %v159, 0
      %v221 = vsel %vm186, %v160, 0
      %v224 = vsel %vm186, %v161, 0
      %v227 = vsel %vm186, %v162, 0
      %v230 = vsel %vm186, %v163, 0
      %v233 = vsel %vm186, %v164, 0
      %v236 = vsel %vm186, %v165, 0
      %v239 = vsel %vm186, %v166, 0
      %v242 = vsel %vm186, %v167, 0
      %v245 = vsel %vm186, %v168, 0
      %v248 = vsel %vm186, %v169, 0
      %v251 = vsel %vm186, %v170, 0
      %v254 = vsel %vm186, %v171, 0
      %v257 = vsel %vm186, %v172, 0
      %v260 = vsel %vm186, %v173, 0
      %v263 = vsel %vm186, %v174, 0
      %v266 = vsel %vm186, %v175, 0
      %v269 = vsel %vm186, %v176, 0
      %v272 = vsel %vm186, %v177, 0
      %v275 = vsel %vm186, %v178, 0
      %v278 = vsel %vm186, %v179, 0
      %v281 = vsel %vm186, %v180, 0
      %vm283 = vcmask 1043456
      %v284 = vsel %vm283, %v184, 0
      %v286 = vsel %vm283, %v185, 0
      %288 = vmatpush.msra.mxu0 0.0
      %289 = vmatpush.msra.mxu0 0.0
      %290 = vmatpush.msra.mxu0 0.0
      %291 = vmatpush.msra.mxu0 0.0
      %292 = vmatpush.msra.mxu0 0.0
      %293 = vmatpush.msra.mxu0 0.0
      %294 = vmatpush.msra.mxu0 0.0
      %295 = vmatpush.msra.mxu0 0.0
      %296 = vmatpush.msra.mxu0 0.0
      %297 = vmatpush.msra.mxu0 0.0
      %298 = vmatpush.msra.mxu0 0.0
      %299 = vmatpush.msra.mxu0 0.0
      %300 = vmatpush.msra.mxu0 0.0
      %301 = vmatpush.msra.mxu0 0.0
      %302 = vmatpush.msra.mxu0 0.0
      %303 = vmatpush.msra.mxu0 %v284
      %304 = vmatmul.f32.gmra.mxu0 %v188
      %v305 = vpop.f32.mrf.mxu0
      %v306 = vadd.f32 0.0, %v305
      %307 = vmatmul.f32.gmra.mxu0 %v191
      %v308 = vpop.f32.mrf.mxu0
      %v309 = vadd.f32 0.0, %v308
      %310 = vmatmul.f32.gmra.mxu0 %v194
      %v311 = vpop.f32.mrf.mxu0
      %v312 = vadd.f32 0.0, %v311
      %313 = vmatmul.f32.gmra.mxu0 %v197
      %v314 = vpop.f32.mrf.mxu0
      %v315 = vadd.f32 0.0, %v314
      %316 = vmatmul.f32.gmra.mxu0 %v200
      %v317 = vpop.f32.mrf.mxu0
      %v318 = vadd.f32 0.0, %v317
      %319 = vmatmul.f32.gmra.mxu0 %v203
      %v320 = vpop.f32.mrf.mxu0
      %v321 = vadd.f32 0.0, %v320
      %322 = vmatmul.f32.gmra.mxu0 %v206
      %v323 = vpop.f32.mrf.mxu0
      %v324 = vadd.f32 0.0, %v323
      %325 = vmatmul.f32.gmra.mxu0 %v209
      %v326 = vpop.f32.mrf.mxu0
      %v327 = vadd.f32 0.0, %v326
      %328 = vmatmul.f32.gmra.mxu0 %v212
      %v329 = vpop.f32.mrf.mxu0
      %v330 = vadd.f32 0.0, %v329
      %331 = vmatmul.f32.gmra.mxu0 %v215
      %v332 = vpop.f32.mrf.mxu0
      %v333 = vadd.f32 0.0, %v332
      %334 = vmatmul.f32.gmra.mxu0 %v218
      %v335 = vpop.f32.mrf.mxu0
      %v336 = vadd.f32 0.0, %v335
      %337 = vmatmul.f32.gmra.mxu0 %v221
      %v338 = vpop.f32.mrf.mxu0
      %v339 = vadd.f32 0.0, %v338
      %340 = vmatmul.f32.gmra.mxu0 %v224
      %v341 = vpop.f32.mrf.mxu0
      %v342 = vadd.f32 0.0, %v341
      %343 = vmatmul.f32.gmra.mxu0 %v227
      %v344 = vpop.f32.mrf.mxu0
      %v345 = vadd.f32 0.0, %v344
      %346 = vmatmul.f32.gmra.mxu0 %v230
      %v347 = vpop.f32.mrf.mxu0
      %v348 = vadd.f32 0.0, %v347
      %349 = vmatmul.f32.gmra.mxu0 %v233
      %v350 = vpop.f32.mrf.mxu0
      %v351 = vadd.f32 0.0, %v350
      %352 = vmatmul.f32.gmra.mxu0 %v236
      %v353 = vpop.f32.mrf.mxu0
      %v354 = vadd.f32 0.0, %v353
      %355 = vmatmul.f32.gmra.mxu0 %v239
      %v356 = vpop.f32.mrf.mxu0
      %v357 = vadd.f32 0.0, %v356
      %358 = vmatmul.f32.gmra.mxu0 %v242
      %v359 = vpop.f32.mrf.mxu0
      %v360 = vadd.f32 0.0, %v359
      %361 = vmatmul.f32.gmra.mxu0 %v245
      %v362 = vpop.f32.mrf.mxu0
      %v363 = vadd.f32 0.0, %v362
      %364 = vmatmul.f32.gmra.mxu0 %v248
      %v365 = vpop.f32.mrf.mxu0
      %v366 = vadd.f32 0.0, %v365
      %367 = vmatmul.f32.gmra.mxu0 %v251
      %v368 = vpop.f32.mrf.mxu0
      %v369 = vadd.f32 0.0, %v368
      %370 = vmatmul.f32.gmra.mxu0 %v254
      %v371 = vpop.f32.mrf.mxu0
      %v372 = vadd.f32 0.0, %v371
      %373 = vmatmul.f32.gmra.mxu0 %v257
      %v374 = vpop.f32.mrf.mxu0
      %v375 = vadd.f32 0.0, %v374
      %376 = vmatmul.f32.gmra.mxu0 %v260
      %v377 = vpop.f32.mrf.mxu0
      %v378 = vadd.f32 0.0, %v377
      %379 = vmatmul.f32.gmra.mxu0 %v263
      %v380 = vpop.f32.mrf.mxu0
      %v381 = vadd.f32 0.0, %v380
      %382 = vmatmul.f32.gmra.mxu0 %v266
      %v383 = vpop.f32.mrf.mxu0
      %v384 = vadd.f32 0.0, %v383
      %385 = vmatmul.f32.gmra.mxu0 %v269
      %v386 = vpop.f32.mrf.mxu0
      %v387 = vadd.f32 0.0, %v386
      %388 = vmatmul.f32.gmra.mxu0 %v272
      %v389 = vpop.f32.mrf.mxu0
      %v390 = vadd.f32 0.0, %v389
      %391 = vmatmul.f32.gmra.mxu0 %v275
      %v392 = vpop.f32.mrf.mxu0
      %v393 = vadd.f32 0.0, %v392
      %394 = vmatmul.f32.gmra.mxu0 %v278
      %v395 = vpop.f32.mrf.mxu0
      %v396 = vadd.f32 0.0, %v395
      %397 = vmatmul.f32.gmra.mxu0 %v281
      %v398 = vpop.f32.mrf.mxu0
      %v399 = vadd.f32 0.0, %v398
      %400 = vdwg.mxu0
      %401 = vmatpush.msra.mxu0 0.0
      %402 = vmatpush.msra.mxu0 0.0
      %403 = vmatpush.msra.mxu0 0.0
      %404 = vmatpush.msra.mxu0 0.0
      %405 = vmatpush.msra.mxu0 0.0
      %406 = vmatpush.msra.mxu0 0.0
      %407 = vmatpush.msra.mxu0 0.0
      %408 = vmatpush.msra.mxu0 0.0
      %409 = vmatpush.msra.mxu0 0.0
      %410 = vmatpush.msra.mxu0 0.0
      %411 = vmatpush.msra.mxu0 0.0
      %412 = vmatpush.msra.mxu0 0.0
      %413 = vmatpush.msra.mxu0 0.0
      %414 = vmatpush.msra.mxu0 0.0
      %415 = vmatpush.msra.mxu0 0.0
      %416 = vmatpush.msra.mxu0 %v286
      %417 = vmatmul.f32.gmra.mxu0 %v188
      %v418 = vpop.f32.mrf.mxu0
      %v419 = vadd.f32 0.0, %v418
      %420 = vmatmul.f32.gmra.mxu0 %v191
      %v421 = vpop.f32.mrf.mxu0
      %v422 = vadd.f32 0.0, %v421
      %423 = vmatmul.f32.gmra.mxu0 %v194
      %v424 = vpop.f32.mrf.mxu0
      %v425 = vadd.f32 0.0, %v424
      %426 = vmatmul.f32.gmra.mxu0 %v197
      %v427 = vpop.f32.mrf.mxu0
      %v428 = vadd.f32 0.0, %v427
      %429 = vmatmul.f32.gmra.mxu0 %v200
      %v430 = vpop.f32.mrf.mxu0
      %v431 = vadd.f32 0.0, %v430
      %432 = vmatmul.f32.gmra.mxu0 %v203
      %v433 = vpop.f32.mrf.mxu0
      %v434 = vadd.f32 0.0, %v433
      %435 = vmatmul.f32.gmra.mxu0 %v206
      %v436 = vpop.f32.mrf.mxu0
      %v437 = vadd.f32 0.0, %v436
      %438 = vmatmul.f32.gmra.mxu0 %v209
      %v439 = vpop.f32.mrf.mxu0
      %v440 = vadd.f32 0.0, %v439
      %441 = vmatmul.f32.gmra.mxu0 %v212
      %v442 = vpop.f32.mrf.mxu0
      %v443 = vadd.f32 0.0, %v442
      %444 = vmatmul.f32.gmra.mxu0 %v215
      %v445 = vpop.f32.mrf.mxu0
      %v446 = vadd.f32 0.0, %v445
      %447 = vmatmul.f32.gmra.mxu0 %v218
      %v448 = vpop.f32.mrf.mxu0
      %v449 = vadd.f32 0.0, %v448
      %450 = vmatmul.f32.gmra.mxu0 %v221
      %v451 = vpop.f32.mrf.mxu0
      %v452 = vadd.f32 0.0, %v451
      %453 = vmatmul.f32.gmra.mxu0 %v224
      %v454 = vpop.f32.mrf.mxu0
      %v455 = vadd.f32 0.0, %v454
      %456 = vmatmul.f32.gmra.mxu0 %v227
      %v457 = vpop.f32.mrf.mxu0
      %v458 = vadd.f32 0.0, %v457
      %459 = vmatmul.f32.gmra.mxu0 %v230
      %v460 = vpop.f32.mrf.mxu0
      %v461 = vadd.f32 0.0, %v460
      %462 = vmatmul.f32.gmra.mxu0 %v233
      %v463 = vpop.f32.mrf.mxu0
      %v464 = vadd.f32 0.0, %v463
      %465 = vmatmul.f32.gmra.mxu0 %v236
      %v466 = vpop.f32.mrf.mxu0
      %v467 = vadd.f32 0.0, %v466
      %468 = vmatmul.f32.gmra.mxu0 %v239
      %v469 = vpop.f32.mrf.mxu0
      %v470 = vadd.f32 0.0, %v469
      %471 = vmatmul.f32.gmra.mxu0 %v242
      %v472 = vpop.f32.mrf.mxu0
      %v473 = vadd.f32 0.0, %v472
      %474 = vmatmul.f32.gmra.mxu0 %v245
      %v475 = vpop.f32.mrf.mxu0
      %v476 = vadd.f32 0.0, %v475
      %477 = vmatmul.f32.gmra.mxu0 %v248
      %v478 = vpop.f32.mrf.mxu0
      %v479 = vadd.f32 0.0, %v478
      %480 = vmatmul.f32.gmra.mxu0 %v251
      %v481 = vpop.f32.mrf.mxu0
      %v482 = vadd.f32 0.0, %v481
      %483 = vmatmul.f32.gmra.mxu0 %v254
      %v484 = vpop.f32.mrf.mxu0
      %v485 = vadd.f32 0.0, %v484
      %486 = vmatmul.f32.gmra.mxu0 %v257
      %v487 = vpop.f32.mrf.mxu0
      %v488 = vadd.f32 0.0, %v487
      %489 = vmatmul.f32.gmra.mxu0 %v260
      %v490 = vpop.f32.mrf.mxu0
      %v491 = vadd.f32 0.0, %v490
      %492 = vmatmul.f32.gmra.mxu0 %v263
      %v493 = vpop.f32.mrf.mxu0
      %v494 = vadd.f32 0.0, %v493
      %495 = vmatmul.f32.gmra.mxu0 %v266
      %v496 = vpop.f32.mrf.mxu0
      %v497 = vadd.f32 0.0, %v496
      %498 = vmatmul.f32.gmra.mxu0 %v269
      %v499 = vpop.f32.mrf.mxu0
      %v500 = vadd.f32 0.0, %v499
      %501 = vmatmul.f32.gmra.mxu0 %v272
      %v502 = vpop.f32.mrf.mxu0
      %v503 = vadd.f32 0.0, %v502
      %504 = vmatmul.f32.gmra.mxu0 %v275
      %v505 = vpop.f32.mrf.mxu0
      %v506 = vadd.f32 0.0, %v505
      %507 = vmatmul.f32.gmra.mxu0 %v278
      %v508 = vpop.f32.mrf.mxu0
      %v509 = vadd.f32 0.0, %v508
      %510 = vmatmul.f32.gmra.mxu0 %v281
      %v511 = vpop.f32.mrf.mxu0
      %v512 = vadd.f32 0.0, %v511
      %513 = vdwg.mxu0
      %514 = vst [vmem:[%s147] sm:$0xff] %v306
      %vm515 = vcmask 1039360
      %516 = vst.msk [vmem:[%s147 + $0x8] sm:$0xff] %vm515, %v419
      %517 = vst [vmem:[%s147 + $0x10] sm:$0xff] %v309
      %518 = vst.msk [vmem:[%s147 + $0x18] sm:$0xff] %vm515, %v422
      %519 = vst [vmem:[%s147 + $0x20] sm:$0xff] %v312
      %520 = vst.msk [vmem:[%s147 + $0x28] sm:$0xff] %vm515, %v425
      %521 = vst [vmem:[%s147 + $0x30] sm:$0xff] %v315
      %522 = vst.msk [vmem:[%s147 + $0x38] sm:$0xff] %vm515, %v428
      %523 = vst [vmem:[%s147 + $0x40] sm:$0xff] %v318
      %524 = vst.msk [vmem:[%s147 + $0x48] sm:$0xff] %vm515, %v431
      %525 = vst [vmem:[%s147 + $0x50] sm:$0xff] %v321
      %526 = vst.msk [vmem:[%s147 + $0x58] sm:$0xff] %vm515, %v434
      %527 = vst [vmem:[%s147 + $0x60] sm:$0xff] %v324
      %528 = vst.msk [vmem:[%s147 + $0x68] sm:$0xff] %vm515, %v437
      %529 = vst [vmem:[%s147 + $0x70] sm:$0xff] %v327
      %530 = vst.msk [vmem:[%s147 + $0x78] sm:$0xff] %vm515, %v440
      %531 = vst [vmem:[%s147 + $0x80] sm:$0xff] %v330
      %532 = vst.msk [vmem:[%s147 + $0x88] sm:$0xff] %vm515, %v443
      %533 = vst [vmem:[%s147 + $0x90] sm:$0xff] %v333
      %534 = vst.msk [vmem:[%s147 + $0x98] sm:$0xff] %vm515, %v446
      %535 = vst [vmem:[%s147 + $0xa0] sm:$0xff] %v336
      %536 = vst.msk [vmem:[%s147 + $0xa8] sm:$0xff] %vm515, %v449
      %537 = vst [vmem:[%s147 + $0xb0] sm:$0xff] %v339
      %538 = vst.msk [vmem:[%s147 + $0xb8] sm:$0xff] %vm515, %v452
      %539 = vst [vmem:[%s147 + $0xc0] sm:$0xff] %v342
      %540 = vst.msk [vmem:[%s147 + $0xc8] sm:$0xff] %vm515, %v455
      %541 = vst [vmem:[%s147 + $0xd0] sm:$0xff] %v345
      %542 = vst.msk [vmem:[%s147 + $0xd8] sm:$0xff] %vm515, %v458
      %543 = vst [vmem:[%s147 + $0xe0] sm:$0xff] %v348
      %544 = vst.msk [vmem:[%s147 + $0xe8] sm:$0xff] %vm515, %v461
      %545 = vst [vmem:[%s147 + $0xf0] sm:$0xff] %v351
      %546 = vst.msk [vmem:[%s147 + $0xf8] sm:$0xff] %vm515, %v464
      %547 = vst [vmem:[%s147 + $0x100] sm:$0xff] %v354
      %548 = vst.msk [vmem:[%s147 + $0x108] sm:$0xff] %vm515, %v467
      %549 = vst [vmem:[%s147 + $0x110] sm:$0xff] %v357
      %550 = vst.msk [vmem:[%s147 + $0x118] sm:$0xff] %vm515, %v470
      %551 = vst [vmem:[%s147 + $0x120] sm:$0xff] %v360
      %552 = vst.msk [vmem:[%s147 + $0x128] sm:$0xff] %vm515, %v473
      %553 = vst [vmem:[%s147 + $0x130] sm:$0xff] %v363
      %554 = vst.msk [vmem:[%s147 + $0x138] sm:$0xff] %vm515, %v476
      %555 = vst [vmem:[%s147 + $0x140] sm:$0xff] %v366
      %556 = vst.msk [vmem:[%s147 + $0x148] sm:$0xff] %vm515, %v479
      %557 = vst [vmem:[%s147 + $0x150] sm:$0xff] %v369
      %558 = vst.msk [vmem:[%s147 + $0x158] sm:$0xff] %vm515, %v482
      %559 = vst [vmem:[%s147 + $0x160] sm:$0xff] %v372
      %560 = vst.msk [vmem:[%s147 + $0x168] sm:$0xff] %vm515, %v485
      %561 = vst [vmem:[%s147 + $0x170] sm:$0xff] %v375
      %562 = vst.msk [vmem:[%s147 + $0x178] sm:$0xff] %vm515, %v488
      %563 = vst [vmem:[%s147 + $0x180] sm:$0xff] %v378
      %564 = vst.msk [vmem:[%s147 + $0x188] sm:$0xff] %vm515, %v491
      %565 = vst [vmem:[%s147 + $0x190] sm:$0xff] %v381
      %566 = vst.msk [vmem:[%s147 + $0x198] sm:$0xff] %vm515, %v494
      %567 = vst [vmem:[%s147 + $0x1a0] sm:$0xff] %v384
      %568 = vst.msk [vmem:[%s147 + $0x1a8] sm:$0xff] %vm515, %v497
      %569 = vst [vmem:[%s147 + $0x1b0] sm:$0xff] %v387
      %570 = vst.msk [vmem:[%s147 + $0x1b8] sm:$0xff] %vm515, %v500
      %571 = vst [vmem:[%s147 + $0x1c0] sm:$0xff] %v390
      %572 = vst.msk [vmem:[%s147 + $0x1c8] sm:$0xff] %vm515, %v503
      %573 = vst [vmem:[%s147 + $0x1d0] sm:$0xff] %v393
      %574 = vst.msk [vmem:[%s147 + $0x1d8] sm:$0xff] %vm515, %v506
      %575 = vst [vmem:[%s147 + $0x1e0] sm:$0xff] %v396
      %576 = vst.msk [vmem:[%s147 + $0x1e8] sm:$0xff] %vm515, %v509
      %577 = vst [vmem:[%s147 + $0x1f0] sm:$0xff] %v399
      %578 = vst.msk [vmem:[%s147 + $0x1f8] sm:$0xff] %vm515, %v512
      %s579 = smul.u32 32, %s13
      %p580 = scmp.lt.s32.totalorder %s579, 63
      %s581 = scalar_select %p580, %s579, 63
      %s582 = smul.addr %s581, 2
      %s583 = smul.addr %s582, 8
      %s584 = scalar_lea.vmem %s2, %s583
      // Predicated region
      $region29: #{yolo_head_forward.1} parent=27 // pred_check
        %p585 = pneg %p78
      $region30: #{yolo_head_forward.1} parent=27 // pred_check_branch
        %587 = sbr.rel (%p585) target = $region32
      $region31: #{yolo_head_forward.1} parent=27 // pred_region
        %s588 = smul.u32 32, %s13
      $region32: #{yolo_head_forward.1} parent=27 // pred_fallthru
        _
    $region28: #{yolo_head_forward.1} parent=5 // pred_fallthru
      _
    %p589 = scmp.le.s32.totalorder 2, %s8
    // Predicated region
    $region33: #{yolo_head_forward.1} parent=5 // pred_check
      %p590 = pneg %p589
    $region34: #{yolo_head_forward.1} parent=5 // pred_check_branch
      %592 = sbr.rel (%p590) target = $region36
    $region35: #{yolo_head_forward.1} parent=5 // pred_region
      %s593 = ssub.s32 %s8, 2
      // Predicated region
      $region37: #{yolo_head_forward.1} parent=35 // pred_check
        %p594 = pneg %p84
      $region38: #{yolo_head_forward.1} parent=35 // pred_check_branch
        %596 = sbr.rel (%p594) target = $region40
      $region39: #{yolo_head_forward.1} parent=35 // pred_region
        %s597 = smul.u32 32, %s14
        %p598 = scmp.lt.s32.totalorder %s597, 63
        %s599 = scalar_select %p598, %s597, 63
        %s600 = smul.addr %s599, 2
        %s601 = smul.addr %s600, 8
        %s602 = scalar_lea.vmem %s2, %s601
      $region40: #{yolo_head_forward.1} parent=35 // pred_fallthru
        _
    $region36: #{yolo_head_forward.1} parent=5 // pred_fallthru
      _
  $region6: #{yolo_head_forward.1} parent=0 // loop_footer
    %s12 = sadd.s32 1, %s8
  $region7: #{yolo_head_forward.1} parent=0 // loop_footer_branch
    %7 = sbr.rel target = $region3
  $region8: #{yolo_head_forward.1} parent=0 // loop_exit
    _

</llo_original>
